<compile_context>
chip_gen: v7x
topology: tpu7x:2x2x1
jax: 0.10.0
libtpu: 0.0.40
codegen_flags: <defaults>
</compile_context>

<pallas_src>
import jax
import jax.numpy as jnp
import numpy as np
from jax.experimental import pallas as pl
from jax.experimental.pallas import tpu as pltpu


def actor_kernel(x_ref, w1_ref, w23_ref, aux_ref, o_ref):
    hid = w1_ref.shape[1]          # 256
    act_pad = o_ref.shape[1]       # 128 (lane-dense padded action dim)

    # Packed small vectors (f32): rows of aux = [b1, b2, b3_pad, scale_pad, bias_pad]
    b1 = aux_ref[0:1, :hid]
    b2 = aux_ref[1:2, :hid]
    b3 = aux_ref[2:3, :act_pad]
    scale = aux_ref[3:4, :act_pad]
    abias = aux_ref[4:5, :act_pad]

    # fc1 + ReLU  (bf16 MXU inputs, f32 accumulate / elementwise)
    x = x_ref[...].astype(jnp.bfloat16)
    h1 = jnp.dot(x, w1_ref[...], preferred_element_type=jnp.float32) + b1
    h1 = jnp.maximum(h1, 0.0).astype(jnp.bfloat16)

    # fc2 + ReLU  (first 256 columns of the concatenated w2|w3 slab; 128-aligned)
    h2 = jnp.dot(h1, w23_ref[:, :hid], preferred_element_type=jnp.float32) + b2
    h2 = jnp.maximum(h2, 0.0).astype(jnp.bfloat16)

    # fc_mu + tanh  (remaining, lane-padded columns; 128-aligned slice)
    mu = jnp.dot(h2, w23_ref[:, hid:hid + act_pad],
                 preferred_element_type=jnp.float32) + b3
    mu = jnp.tanh(mu)

    # rescale to action range; padded lanes are zero and get sliced off outside
    o_ref[...] = mu * scale + abias


def _round_up(x, m):
    return ((x + m - 1) // m) * m


def _choose_block_b(B):
    """Adaptive batch tile.

    Small batches (RL inference): one tile of round_up(B, 8) rows -- batch is
    the sublane (second-to-last) dim, so any multiple of 8 is legal and the
    MXU still needs exactly one pass per layer.

    Large batches: big tiles amortize per-grid-step overhead; cap at 1024 to
    stay comfortably under v5e's 16 MiB scoped VMEM, and halve until there are
    at least 2 grid steps so v7x's two TensorCores can both run the
    "parallel" batch axis.
    """
    if B <= 512:
        return max(8, _round_up(B, 8))
    bb = 1024
    while bb > 256 and _round_up(B, bb) // bb < 2:
        bb //= 2
    return bb


def actor_forward(x, params, *, block_b=None, return_padded=False):
    """x: [B, obs_dim] float32 -> [B, act_dim] float32 (or padded [b_pad, act_pad])."""
    B, obs_dim = x.shape
    act_dim = params["act_dim"]
    act_pad = params["act_pad"]
    w1, w23, aux = params["w1"], params["w23"], params["aux"]
    hid = w1.shape[1]

    if block_b is None:
        block_b = _choose_block_b(B)

    # Pad batch up to a whole number of batch tiles (padded rows are zero and
    # compute harmless, bounded garbage that is sliced off below).
    b_pad = _round_up(B, block_b)
    if b_pad != B:
        x = jnp.pad(x, ((0, b_pad - B), (0, 0)))

    cost = pl.CostEstimate(
        flops=2 * b_pad * (obs_dim * hid + hid * hid + hid * act_pad),
        transcendentals=b_pad * act_pad,                       # tanh
        bytes_accessed=(x.size * 4 + w1.size * 2 + w23.size * 2
                        + aux.size * 4 + b_pad * act_pad * 4),
    )

    out = pl.pallas_call(
        actor_kernel,
        out_shape=jax.ShapeDtypeStruct((b_pad, act_pad), jnp.float32),
        grid=(b_pad // block_b,),
        in_specs=[
            pl.BlockSpec((block_b, obs_dim), lambda b: (b, 0)),   # activations
            pl.BlockSpec(w1.shape, lambda b: (0, 0)),             # resident
            pl.BlockSpec(w23.shape, lambda b: (0, 0)),             # resident
            pl.BlockSpec(aux.shape, lambda b: (0, 0)),             # resident
        ],
        out_specs=pl.BlockSpec((block_b, act_pad), lambda b: (b, 0)),
        compiler_params=pltpu.CompilerParams(
            dimension_semantics=("parallel",)),
        cost_estimate=cost,
    )(x, w1, w23, aux)

    if return_padded:
        # Large-B consumers can read the lane-dense padded buffer directly and
        # skip the extra HBM round trip of the slice below.
        return out
    return out[:B, :act_dim]


def init_params(key, obs_dim, hidden, act_dim, action_low, action_high):
    act_pad = max(128, ((act_dim + 127) // 128) * 128)
    # Lock in 128-lane-aligned in-kernel slices of the w23 / aux slabs
    # (misaligned VMEM slices materialize copies).
    assert hidden % 128 == 0, "hidden must be a multiple of 128"
    assert act_pad % 128 == 0, "act_pad must be a multiple of 128"

    ks = jax.random.split(key, 6)

    def lin(kw, kb, fan_in, fan_out):
        # PyTorch nn.Linear default init: U(-1/sqrt(fan_in), 1/sqrt(fan_in))
        bound = 1.0 / np.sqrt(fan_in)
        w = jax.random.uniform(kw, (fan_in, fan_out), jnp.float32, -bound, bound)
        b = jax.random.uniform(kb, (fan_out,), jnp.float32, -bound, bound)
        return w, b

    w1, b1 = lin(ks[0], ks[1], obs_dim, hidden)
    w2, b2 = lin(ks[2], ks[3], hidden, hidden)
    w3, b3 = lin(ks[4], ks[5], hidden, act_dim)

    # Pad fc_mu to a lane-dense (128-multiple) output width, concat w2|w3_pad,
    # store weights in bf16 for the MXU's native path.
    # Invariant: columns >= act_dim of w3p / b3 / scale / bias must stay zero
    # so the padded output lanes are exactly zero (they are sliced off).
    w3p = jnp.zeros((hidden, act_pad), jnp.float32).at[:, :act_dim].set(w3)
    w1_bf = w1.astype(jnp.bfloat16)
    w23_bf = jnp.concatenate([w2, w3p], axis=1).astype(jnp.bfloat16)

    scale = np.asarray((action_high - action_low) / 2.0, dtype=np.float32)
    abias = np.asarray((action_high + action_low) / 2.0, dtype=np.float32)

    aux_w = max(hidden, act_pad)
    aux = jnp.zeros((8, aux_w), jnp.float32)
    aux = aux.at[0, :hidden].set(b1)
    aux = aux.at[1, :hidden].set(b2)
    aux = aux.at[2, :act_dim].set(b3)
    aux = aux.at[3, :act_dim].set(jnp.asarray(scale))
    aux = aux.at[4, :act_dim].set(jnp.asarray(abias))

    return {"w1": w1_bf, "w23": w23_bf, "aux": aux,
            "act_dim": act_dim, "act_pad": act_pad}


def actor_ref(x, p):
    """Pure-JAX reference using the same bf16 weights / f32 accumulate."""
    hid = p["w1"].shape[1]
    act_pad, act_dim = p["act_pad"], p["act_dim"]
    w1 = p["w1"]
    w2 = p["w23"][:, :hid]
    w3 = p["w23"][:, hid:hid + act_pad]
    b1 = p["aux"][0:1, :hid]
    b2 = p["aux"][1:2, :hid]
    b3 = p["aux"][2:3, :act_pad]
    scale = p["aux"][3:4, :act_pad]
    abias = p["aux"][4:5, :act_pad]

    h1 = jnp.maximum(jnp.dot(x.astype(jnp.bfloat16), w1,
                             preferred_element_type=jnp.float32) + b1, 0.0)
    h2 = jnp.maximum(jnp.dot(h1.astype(jnp.bfloat16), w2,
                             preferred_element_type=jnp.float32) + b2, 0.0)
    mu = jnp.tanh(jnp.dot(h2.astype(jnp.bfloat16), w3,
                          preferred_element_type=jnp.float32) + b3)
    return (mu * scale + abias)[:, :act_dim]


if __name__ == "__main__":
    key = jax.random.PRNGKey(0)
    k_x, k_p = jax.random.split(key)

    batch = 2
    obs_dim = 8       # env.observation_space.shape[0]
    hidden = 256
    act_dim = 4       # env.action_space.shape[0]
    action_low = np.full((act_dim,), -2.0, dtype=np.float32)
    action_high = np.full((act_dim,), 2.0, dtype=np.float32)

    x = jax.random.normal(k_x, (batch, obs_dim), dtype=jnp.float32)
    params = init_params(k_p, obs_dim, hidden, act_dim, action_low, action_high)

    # Small-batch path (adaptive block_b -> 8 rows, single grid step)
    out = actor_forward(x, params)
    jax.block_until_ready(out)

    ref = actor_ref(x, params)
    assert out.shape == (batch, act_dim)
    assert jnp.allclose(out, ref, atol=1e-2, rtol=1e-2), "mismatch vs JAX reference"
    # sanity: actions are inside the [low, high] range
    assert bool(jnp.all(out <= action_high[None, :] + 1e-3))
    assert bool(jnp.all(out >= action_low[None, :] - 1e-3))

    # Larger-batch path: exercises multi-tile grid (>= 2 steps for megacore)
    xb = jax.random.normal(jax.random.PRNGKey(1), (600, obs_dim), dtype=jnp.float32)
    outb = actor_forward(xb, params)
    jax.block_until_ready(outb)
    refb = actor_ref(xb, params)
    assert outb.shape == (600, act_dim)
    assert jnp.allclose(outb, refb, atol=1e-2, rtol=1e-2), "large-batch mismatch"

    print("KERNEL_OK")
</pallas_src>

<mosaic_0001>
module attributes {stable_mosaic.version = 11 : i64} {
  func.func @actor_kernel(%arg0: i32, %arg1: memref<8x8xf32, #tpu.memory_space<vmem>>, %arg2: memref<8x256xbf16, #tpu.memory_space<vmem>>, %arg3: memref<256x384xbf16, #tpu.memory_space<vmem>>, %arg4: memref<8x256xf32, #tpu.memory_space<vmem>>, %arg5: memref<8x128xf32, #tpu.memory_space<vmem>>) attributes {dimension_semantics = [#tpu.dimension_semantics<parallel>], iteration_bounds = array<i64: 1>, scalar_prefetch = 0 : i64, scratch_operands = 0 : i64, tpu.core_type = #tpu.core_type<tc>, window_params = [{transform_indices = @transform_0, window_bounds = array<i64: 8, 8>}, {pipeline_mode = #tpu.pipeline_mode<synchronous>, transform_indices = @transform_1, window_bounds = array<i64: 8, 256>}, {pipeline_mode = #tpu.pipeline_mode<synchronous>, transform_indices = @transform_2, window_bounds = array<i64: 256, 384>}, {pipeline_mode = #tpu.pipeline_mode<synchronous>, transform_indices = @transform_3, window_bounds = array<i64: 8, 256>}, {transform_indices = @transform_4, window_bounds = array<i64: 8, 128>}]} {
    %c0 = arith.constant 0 : index
    %c0_0 = arith.constant 0 : index
    %0 = vector.load %arg4[%c0, %c0_0] : memref<8x256xf32, #tpu.memory_space<vmem>>, vector<1x256xf32>
    %c1 = arith.constant 1 : index
    %c0_1 = arith.constant 0 : index
    %1 = vector.load %arg4[%c1, %c0_1] : memref<8x256xf32, #tpu.memory_space<vmem>>, vector<1x256xf32>
    %c2 = arith.constant 2 : index
    %c0_2 = arith.constant 0 : index
    %2 = vector.load %arg4[%c2, %c0_2] : memref<8x256xf32, #tpu.memory_space<vmem>>, vector<1x128xf32>
    %c3 = arith.constant 3 : index
    %c0_3 = arith.constant 0 : index
    %3 = vector.load %arg4[%c3, %c0_3] : memref<8x256xf32, #tpu.memory_space<vmem>>, vector<1x128xf32>
    %c4 = arith.constant 4 : index
    %c0_4 = arith.constant 0 : index
    %4 = vector.load %arg4[%c4, %c0_4] : memref<8x256xf32, #tpu.memory_space<vmem>>, vector<1x128xf32>
    %c0_5 = arith.constant 0 : index
    %c0_6 = arith.constant 0 : index
    %5 = vector.load %arg1[%c0_5, %c0_6] : memref<8x8xf32, #tpu.memory_space<vmem>>, vector<8x8xf32>
    %6 = arith.truncf %5 : vector<8x8xf32> to vector<8x8xbf16>
    %c0_7 = arith.constant 0 : index
    %c0_8 = arith.constant 0 : index
    %7 = vector.load %arg2[%c0_7, %c0_8] : memref<8x256xbf16, #tpu.memory_space<vmem>>, vector<8x256xbf16>
    %cst = arith.constant dense<0.000000e+00> : vector<8x256xf32>
    %8 = tpu.matmul %6, %7, %cst {dimension_numbers = #tpu.dot_dimension_numbers<[1], [0], [0], [1], [0, 0, 1, 1], [], []>} : vector<8x8xbf16>, vector<8x256xbf16>, vector<8x256xf32> -> vector<8x256xf32>
    %9 = vector.broadcast %0 : vector<1x256xf32> to vector<8x256xf32>
    %10 = arith.addf %8, %9 : vector<8x256xf32>
    %cst_9 = arith.constant 0.000000e+00 : f32
    %11 = vector.broadcast %cst_9 : f32 to vector<8x256xf32>
    %12 = arith.maximumf %10, %11 : vector<8x256xf32>
    %13 = arith.truncf %12 : vector<8x256xf32> to vector<8x256xbf16>
    %c0_10 = arith.constant 0 : index
    %c0_11 = arith.constant 0 : index
    %14 = vector.load %arg3[%c0_10, %c0_11] : memref<256x384xbf16, #tpu.memory_space<vmem>>, vector<256x256xbf16>
    %cst_12 = arith.constant dense<0.000000e+00> : vector<8x256xf32>
    %15 = tpu.matmul %13, %14, %cst_12 {dimension_numbers = #tpu.dot_dimension_numbers<[1], [0], [0], [1], [0, 0, 1, 1], [], []>} : vector<8x256xbf16>, vector<256x256xbf16>, vector<8x256xf32> -> vector<8x256xf32>
    %16 = vector.broadcast %1 : vector<1x256xf32> to vector<8x256xf32>
    %17 = arith.addf %15, %16 : vector<8x256xf32>
    %cst_13 = arith.constant 0.000000e+00 : f32
    %18 = vector.broadcast %cst_13 : f32 to vector<8x256xf32>
    %19 = arith.maximumf %17, %18 : vector<8x256xf32>
    %20 = arith.truncf %19 : vector<8x256xf32> to vector<8x256xbf16>
    %c0_14 = arith.constant 0 : index
    %c256 = arith.constant 256 : index
    %21 = vector.load %arg3[%c0_14, %c256] : memref<256x384xbf16, #tpu.memory_space<vmem>>, vector<256x128xbf16>
    %cst_15 = arith.constant dense<0.000000e+00> : vector<8x128xf32>
    %22 = tpu.matmul %20, %21, %cst_15 {dimension_numbers = #tpu.dot_dimension_numbers<[1], [0], [0], [1], [0, 0, 1, 1], [], []>} : vector<8x256xbf16>, vector<256x128xbf16>, vector<8x128xf32> -> vector<8x128xf32>
    %23 = vector.broadcast %2 : vector<1x128xf32> to vector<8x128xf32>
    %24 = arith.addf %22, %23 : vector<8x128xf32>
    %25 = math.tanh %24 : vector<8x128xf32>
    %26 = vector.broadcast %3 : vector<1x128xf32> to vector<8x128xf32>
    %27 = arith.mulf %25, %26 : vector<8x128xf32>
    %28 = vector.broadcast %4 : vector<1x128xf32> to vector<8x128xf32>
    %29 = arith.addf %27, %28 : vector<8x128xf32>
    %c0_16 = arith.constant 0 : index
    %c0_17 = arith.constant 0 : index
    %30 = vector.load %arg5[%c0_16, %c0_17] : memref<8x128xf32, #tpu.memory_space<vmem>>, vector<8x128xf32>
    tpu.vector_store %arg5[%c0_16, %c0_17], %29 {strides = array<i32>} : memref<8x128xf32, #tpu.memory_space<vmem>>, vector<8x128xf32>,
    return
  }
  func.func @transform_0(%arg0: i32) -> (i32, i32) {
    %c0_i32 = arith.constant 0 : i32
    %c0_i32_0 = arith.constant 0 : i32
    return %arg0, %c0_i32 : i32, i32
  }
  func.func @transform_1(%arg0: i32) -> (i32, i32) {
    %c0_i32 = arith.constant 0 : i32
    %c0_i32_0 = arith.constant 0 : i32
    %c0_i32_1 = arith.constant 0 : i32
    return %c0_i32, %c0_i32_0 : i32, i32
  }
  func.func @transform_2(%arg0: i32) -> (i32, i32) {
    %c0_i32 = arith.constant 0 : i32
    %c0_i32_0 = arith.constant 0 : i32
    %c0_i32_1 = arith.constant 0 : i32
    return %c0_i32, %c0_i32_0 : i32, i32
  }
  func.func @transform_3(%arg0: i32) -> (i32, i32) {
    %c0_i32 = arith.constant 0 : i32
    %c0_i32_0 = arith.constant 0 : i32
    %c0_i32_1 = arith.constant 0 : i32
    return %c0_i32, %c0_i32_0 : i32, i32
  }
  func.func @transform_4(%arg0: i32) -> (i32, i32) {
    %c0_i32 = arith.constant 0 : i32
    %c0_i32_0 = arith.constant 0 : i32
    return %arg0, %c0_i32 : i32, i32
  }
}

</mosaic_0001>

<llo_original>
// kernel: tpu_custom_call.1
$region0: #{tpu_custom_call.1}
  #allocation0 [shape = 'u32[]', space=smem, size = 0x4, offset = 0x4, fixed_abs, tag = 'smem constant byte address 0x4 - core index']
  #allocation1 [shape = 'u32[144,128]{1,0:T(1,128)}', space=vmem, size = 0x12000, scoped, tag = 'internal scratch']
  %s0 = inlined_call_operand.hbm [shape: f32[8,8], index: 0, kind: input, shape index: {}]
  %s1 = inlined_call_operand.hbm [shape: bf16[8,256], index: 1, kind: input, shape index: {}]
  %s2 = inlined_call_operand.hbm [shape: bf16[256,384], index: 2, kind: input, shape index: {}]
  %s3 = inlined_call_operand.hbm [shape: f32[8,256], index: 3, kind: input, shape index: {}]
  %s4 = inlined_call_operand.hbm [shape: f32[8,128], index: 4, kind: output, shape index: {}]
  %s5 = sld [smem:[#allocation0]]
  $region42: #{tpu_custom_call.1} parent=0
    _
  %s7 = ssub.s32 1, %s5
  %s8 = scalar_select 0, %s7, %s5
  $region1: #{tpu_custom_call.1} parent=0
    #allocation2 [shape = 'u8[4096]{0}', space=vmem, size = 0x1000, scoped, tag = 'input window, operand 0, single buffered']
    #allocation3 [shape = 's32[1]{0}', space=sflag, size = 0x4, scoped, tag = 'scoped memory for tpu_custom_call.1']
    #allocation4 [shape = 's32[1]{0}', space=sflag, size = 0x4, scoped, tag = 'scoped memory for tpu_custom_call.1']
    #allocation5 [shape = 'u8[4096]{0}', space=vmem, size = 0x1000, scoped, tag = 'input window, operand 1, single buffered']
    #allocation6 [shape = 's32[1]{0}', space=sflag, size = 0x4, scoped, tag = 'scoped memory for tpu_custom_call.1']
    #allocation7 [shape = 'u8[196608]{0}', space=vmem, size = 0x30000, scoped, tag = 'input window, operand 2, single buffered']
    #allocation8 [shape = 'u8[8192]{0}', space=vmem, size = 0x2000, scoped, tag = 'input window, operand 3, single buffered']
    #allocation9 [shape = 's32[1]{0}', space=sflag, size = 0x4, scoped, tag = 'scoped memory for tpu_custom_call.1']
    #allocation10 [shape = 'u8[4096]{0}', space=vmem, size = 0x1000, scoped, tag = 'output window, operand 0, single buffered']
    %9 = vsyncpa [#allocation3], 0
    %10 = vsyncpa [#allocation6], 0
    %11 = vsyncpa [#allocation9], 0
    %12 = vsyncpa [#allocation4], 0
    // Predicated region
    $region2: #{tpu_custom_call.1} parent=1 // pred_check
      _
    $region3: #{tpu_custom_call.1} parent=1 // pred_check_branch
      %14 = sbr.rel (0) target = $region5
    $region4: #{tpu_custom_call.1} parent=1 // pred_region
      %s16 = ssub.s32 128, 128
      %17 = vsyncadd [#allocation3], %s16
      %s19 = sshll.u32 [#allocation2], 4
      %s20 = int_to_ptr.vmem [resolvable:$true] %s19
      %22 = dma.hbm_to_vmem [thread:$0]  %s0, 128, %s20, [#allocation3]
    $region5: #{tpu_custom_call.1} parent=1 // pred_fallthru
      _
    // Predicated region
    $region6: #{tpu_custom_call.1} parent=1 // pred_check
      _
    $region7: #{tpu_custom_call.1} parent=1 // pred_check_branch
      %24 = sbr.rel (0) target = $region9
    $region8: #{tpu_custom_call.1} parent=1 // pred_region
      %s26 = ssub.s32 128, 128
      %27 = vsyncadd [#allocation6], %s26
      %s29 = sshll.u32 [#allocation5], 4
      %s30 = int_to_ptr.vmem [resolvable:$true] %s29
      %32 = dma.hbm_to_vmem [thread:$0]  %s1, 128, %s30, [#allocation6]
    $region9: #{tpu_custom_call.1} parent=1 // pred_fallthru
      _
    // Predicated region
    $region10: #{tpu_custom_call.1} parent=1 // pred_check
      _
    $region11: #{tpu_custom_call.1} parent=1 // pred_check_branch
      %34 = sbr.rel (0) target = $region13
    $region12: #{tpu_custom_call.1} parent=1 // pred_region
      %s36 = ssub.s32 6144, 6144
      %37 = vsyncadd [#allocation6], %s36
      %s38 = sshll.u32 [#allocation7], 4
      %s39 = int_to_ptr.vmem [resolvable:$true] %s38
      %44 = dma.hbm_to_vmem [thread:$0]  %s2, 6144, %s39, [#allocation6], 192, 192, 12
    $region13: #{tpu_custom_call.1} parent=1 // pred_fallthru
      _
    // Predicated region
    $region14: #{tpu_custom_call.1} parent=1 // pred_check
      _
    $region15: #{tpu_custom_call.1} parent=1 // pred_check_branch
      %46 = sbr.rel (0) target = $region17
    $region16: #{tpu_custom_call.1} parent=1 // pred_region
      %s48 = ssub.s32 256, 256
      %49 = vsyncadd [#allocation9], %s48
      %s51 = sshll.u32 [#allocation8], 4
      %s52 = int_to_ptr.vmem [resolvable:$true] %s51
      %54 = dma.hbm_to_vmem [thread:$0]  %s3, 256, %s52, [#allocation9]
    $region17: #{tpu_custom_call.1} parent=1 // pred_fallthru
      _
    // Predicated region
    $region18: #{tpu_custom_call.1} parent=1 // pred_check
      _
    $region19: #{tpu_custom_call.1} parent=1 // pred_check_branch
      %56 = sbr.rel (0) target = $region21
    $region20: #{tpu_custom_call.1} parent=1 // pred_region
      %57 = dma.done [#allocation3], 128
    $region21: #{tpu_custom_call.1} parent=1 // pred_fallthru
      _
    // Predicated region
    $region22: #{tpu_custom_call.1} parent=1 // pred_check
      _
    $region23: #{tpu_custom_call.1} parent=1 // pred_check_branch
      %59 = sbr.rel (0) target = $region25
    $region24: #{tpu_custom_call.1} parent=1 // pred_region
      %60 = dma.done [#allocation6], 128
    $region25: #{tpu_custom_call.1} parent=1 // pred_fallthru
      _
    // Predicated region
    $region26: #{tpu_custom_call.1} parent=1 // pred_check
      _
    $region27: #{tpu_custom_call.1} parent=1 // pred_check_branch
      %62 = sbr.rel (0) target = $region29
    $region28: #{tpu_custom_call.1} parent=1 // pred_region
      %63 = dma.done [#allocation6], 6144
    $region29: #{tpu_custom_call.1} parent=1 // pred_fallthru
      _
    // Predicated region
    $region30: #{tpu_custom_call.1} parent=1 // pred_check
      _
    $region31: #{tpu_custom_call.1} parent=1 // pred_check_branch
      %65 = sbr.rel (0) target = $region33
    $region32: #{tpu_custom_call.1} parent=1 // pred_region
      %66 = dma.done [#allocation9], 256
    $region33: #{tpu_custom_call.1} parent=1 // pred_fallthru
      _
    %v68 = vld [vmem:[#allocation8] ss:$8 sm:$0x3]
    %s69 = scalar_lea.vmem [#allocation8], 1
    %v70 = vld [vmem:[%s69] ss:$8 sm:$0x3]
    %v71 = vld [vmem:[#allocation8 + $0x2] ss:$0 sm:$0xff]
    %v72 = vld [vmem:[#allocation8 + $0x3] ss:$0 sm:$0xff]
    %v73 = vld [vmem:[#allocation8 + $0x4] ss:$0 sm:$0xff]
    %v74 = vld [vmem:[#allocation2] sm:$0xff]
    %v75 = vpack.c.bf16 %v74, %v74
    %v76 = vld [vmem:[#allocation5] sm:$0xff]
    %v78 = vlaneseq
    %v79 = vshrl.u32 %v78, 7
    %v80 = vsub.s32 0, %v79
    %v81 = vrot.slane %v68, %v80
    %v82 = vlaneseq
    %v83 = vshrl.u32 %v82, 7
    %v84 = vsub.s32 1, %v83
    %v85 = vrot.slane %v68, %v84
    %v89 = vunpack.c.l.b16 %v76
    %v90 = vunpack.c.h.b16 %v76
    %v91 = vpack.c.b16 %v89, %v89
    %v92 = vpack.c.b16 %v90, %v90
    %vm93 = vcmask 64512
    %v95 = vsel %vm93, %v75, 0
    %vm97 = vcmask 1043456
    %v99 = vsel %vm97, %v91, 0
    %v102 = vsel %vm97, %v92, 0
    %104 = vmatprep.subr.bf16.mxu0 %v102
    %105 = vmatpush1.bf16.msra.mxu0 %v99
    %106 = vmatprep.subr.bf16.mxu0 0
    %107 = vmatpush1.bf16.msra.mxu0 0
    %108 = vmatprep.subr.bf16.mxu0 0
    %109 = vmatpush1.bf16.msra.mxu0 0
    %110 = vmatprep.subr.bf16.mxu0 0
    %111 = vmatpush1.bf16.msra.mxu0 0
    %112 = vmatprep.subr.bf16.mxu0 0
    %113 = vmatpush1.bf16.msra.mxu0 0
    %114 = vmatprep.subr.bf16.mxu0 0
    %115 = vmatpush1.bf16.msra.mxu0 0
    %116 = vmatprep.subr.bf16.mxu0 0
    %117 = vmatpush1.bf16.msra.mxu0 0
    %118 = vmatprep.subr.bf16.mxu0 0
    %119 = vmatpush1.bf16.msra.mxu0 0
    %120 = vmatprep.subr.bf16.mxu0 0
    %121 = vmatpush1.bf16.msra.mxu0 0
    %122 = vmatprep.subr.bf16.mxu0 0
    %123 = vmatpush1.bf16.msra.mxu0 0
    %124 = vmatprep.subr.bf16.mxu0 0
    %125 = vmatpush1.bf16.msra.mxu0 0
    %126 = vmatprep.subr.bf16.mxu0 0
    %127 = vmatpush1.bf16.msra.mxu0 0
    %128 = vmatprep.subr.bf16.mxu0 0
    %129 = vmatpush1.bf16.msra.mxu0 0
    %130 = vmatprep.subr.bf16.mxu0 0
    %131 = vmatpush1.bf16.msra.mxu0 0
    %132 = vmatprep.subr.bf16.mxu0 0
    %133 = vmatpush1.bf16.msra.mxu0 0
    %134 = vmatprep.subr.bf16.mxu0 0
    %135 = vmatpush1.bf16.msra.mxu0 0
    %136 = vmatprep.mubr.bf16.mxu0 0
    %137 = vmatmul.mubr.bf16.gmra.mrb[0].mxu0 %v95
    %v138 = vpop.f32.mrb[0].mxu0
    %v139 = vadd.f32 %v81, %v138
    %v140 = vpop.f32.mrb[0].mxu0
    %v141 = vadd.f32 %v85, %v140
    %v142 = vpop.f32.mrb[0].mxu0
    %v143 = vpop.f32.mrb[0].mxu0
    %144 = vdwg.mxu0
    %v145 = vmax.f32 %v139, 0.0
    %v146 = vmax.f32 %v141, 0.0
    %v147 = vpack.c.bf16 %v145, %v145
    %v148 = vpack.c.bf16 %v146, %v146
    %v149 = vld [vmem:[#allocation7] sm:$0xff]
    %v150 = vld [vmem:[#allocation7 + $0xc] sm:$0xff]
    %v151 = vld [vmem:[#allocation7 + $0x18] sm:$0xff]
    %v152 = vld [vmem:[#allocation7 + $0x24] sm:$0xff]
    %v153 = vld [vmem:[#allocation7 + $0x30] sm:$0xff]
    %v154 = vld [vmem:[#allocation7 + $0x3c] sm:$0xff]
    %v155 = vld [vmem:[#allocation7 + $0x48] sm:$0xff]
    %v156 = vld [vmem:[#allocation7 + $0x54] sm:$0xff]
    %v157 = vld [vmem:[#allocation7 + $0x60] sm:$0xff]
    %v158 = vld [vmem:[#allocation7 + $0x6c] sm:$0xff]
    %v159 = vld [vmem:[#allocation7 + $0x78] sm:$0xff]
    %v160 = vld [vmem:[#allocation7 + $0x84] sm:$0xff]
    %v161 = vld [vmem:[#allocation7 + $0x90] sm:$0xff]
    %v162 = vld [vmem:[#allocation7 + $0x9c] sm:$0xff]
    %v163 = vld [vmem:[#allocation7 + $0xa8] sm:$0xff]
    %v164 = vld [vmem:[#allocation7 + $0xb4] sm:$0xff]
    %v165 = vld [vmem:[#allocation7 + $0xc0] sm:$0xff]
    %v166 = vld [vmem:[#allocation7 + $0xcc] sm:$0xff]
    %v167 = vld [vmem:[#allocation7 + $0xd8] sm:$0xff]
    %v168 = vld [vmem:[#allocation7 + $0xe4] sm:$0xff]
    %v169 = vld [vmem:[#allocation7 + $0xf0] sm:$0xff]
    %v170 = vld [vmem:[#allocation7 + $0xfc] sm:$0xff]
    %v171 = vld [vmem:[#allocation7 + $0x108] sm:$0xff]
    %v172 = vld [vmem:[#allocation7 + $0x114] sm:$0xff]
    %v173 = vld [vmem:[#allocation7 + $0x120] sm:$0xff]
    %v174 = vld [vmem:[#allocation7 + $0x12c] sm:$0xff]
    %v175 = vld [vmem:[#allocation7 + $0x138] sm:$0xff]
    %v176 = vld [vmem:[#allocation7 + $0x144] sm:$0xff]
    %v177 = vld [vmem:[#allocation7 + $0x150] sm:$0xff]
    %v178 = vld [vmem:[#allocation7 + $0x15c] sm:$0xff]
    %v179 = vld [vmem:[#allocation7 + $0x168] sm:$0xff]
    %v180 = vld [vmem:[#allocation7 + $0x174] sm:$0xff]
    %v182 = vlaneseq
    %v183 = vshrl.u32 %v182, 7
    %v184 = vsub.s32 0, %v183
    %v185 = vrot.slane %v70, %v184
    %v186 = vlaneseq
    %v187 = vshrl.u32 %v186, 7
    %v188 = vsub.s32 1, %v187
    %v189 = vrot.slane %v70, %v188
    %v224 = vunpack.c.l.b16 %v149
    %v225 = vunpack.c.h.b16 %v149
    %v226 = vunpack.c.l.b16 %v150
    %v227 = vunpack.c.h.b16 %v150
    %v228 = vunpack.c.l.b16 %v151
    %v229 = vunpack.c.h.b16 %v151
    %v230 = vunpack.c.l.b16 %v152
    %v231 = vunpack.c.h.b16 %v152
    %v232 = vunpack.c.l.b16 %v153
    %v233 = vunpack.c.h.b16 %v153
    %v234 = vunpack.c.l.b16 %v154
    %v235 = vunpack.c.h.b16 %v154
    %v236 = vunpack.c.l.b16 %v155
    %v237 = vunpack.c.h.b16 %v155
    %v238 = vunpack.c.l.b16 %v156
    %v239 = vunpack.c.h.b16 %v156
    %v240 = vunpack.c.l.b16 %v157
    %v241 = vunpack.c.h.b16 %v157
    %v242 = vunpack.c.l.b16 %v158
    %v243 = vunpack.c.h.b16 %v158
    %v244 = vunpack.c.l.b16 %v159
    %v245 = vunpack.c.h.b16 %v159
    %v246 = vunpack.c.l.b16 %v160
    %v247 = vunpack.c.h.b16 %v160
    %v248 = vunpack.c.l.b16 %v161
    %v249 = vunpack.c.h.b16 %v161
    %v250 = vunpack.c.l.b16 %v162
    %v251 = vunpack.c.h.b16 %v162
    %v252 = vunpack.c.l.b16 %v163
    %v253 = vunpack.c.h.b16 %v163
    %v254 = vunpack.c.l.b16 %v164
    %v255 = vunpack.c.h.b16 %v164
    %v256 = vunpack.c.l.b16 %v165
    %v257 = vunpack.c.h.b16 %v165
    %v258 = vunpack.c.l.b16 %v166
    %v259 = vunpack.c.h.b16 %v166
    %v260 = vunpack.c.l.b16 %v167
    %v261 = vunpack.c.h.b16 %v167
    %v262 = vunpack.c.l.b16 %v168
    %v263 = vunpack.c.h.b16 %v168
    %v264 = vunpack.c.l.b16 %v169
    %v265 = vunpack.c.h.b16 %v169
    %v266 = vunpack.c.l.b16 %v170
    %v267 = vunpack.c.h.b16 %v170
    %v268 = vunpack.c.l.b16 %v171
    %v269 = vunpack.c.h.b16 %v171
    %v270 = vunpack.c.l.b16 %v172
    %v271 = vunpack.c.h.b16 %v172
    %v272 = vunpack.c.l.b16 %v173
    %v273 = vunpack.c.h.b16 %v173
    %v274 = vunpack.c.l.b16 %v174
    %v275 = vunpack.c.h.b16 %v174
    %v276 = vunpack.c.l.b16 %v175
    %v277 = vunpack.c.h.b16 %v175
    %v278 = vunpack.c.l.b16 %v176
    %v279 = vunpack.c.h.b16 %v176
    %v280 = vunpack.c.l.b16 %v177
    %v281 = vunpack.c.h.b16 %v177
    %v282 = vunpack.c.l.b16 %v178
    %v283 = vunpack.c.h.b16 %v178
    %v284 = vunpack.c.l.b16 %v179
    %v285 = vunpack.c.h.b16 %v179
    %v286 = vunpack.c.l.b16 %v180
    %v287 = vunpack.c.h.b16 %v180
    %v288 = vpack.c.b16 %v226, %v224
    %v289 = vpack.c.b16 %v227, %v225
    %v290 = vpack.c.b16 %v230, %v228
    %v291 = vpack.c.b16 %v231, %v229
    %v292 = vpack.c.b16 %v234, %v232
    %v293 = vpack.c.b16 %v235, %v233
    %v294 = vpack.c.b16 %v238, %v236
    %v295 = vpack.c.b16 %v239, %v237
    %v296 = vpack.c.b16 %v242, %v240
    %v297 = vpack.c.b16 %v243, %v241
    %v298 = vpack.c.b16 %v246, %v244
    %v299 = vpack.c.b16 %v247, %v245
    %v300 = vpack.c.b16 %v250, %v248
    %v301 = vpack.c.b16 %v251, %v249
    %v302 = vpack.c.b16 %v254, %v252
    %v303 = vpack.c.b16 %v255, %v253
    %v304 = vpack.c.b16 %v258, %v256
    %v305 = vpack.c.b16 %v259, %v257
    %v306 = vpack.c.b16 %v262, %v260
    %v307 = vpack.c.b16 %v263, %v261
    %v308 = vpack.c.b16 %v266, %v264
    %v309 = vpack.c.b16 %v267, %v265
    %v310 = vpack.c.b16 %v270, %v268
    %v311 = vpack.c.b16 %v271, %v269
    %v312 = vpack.c.b16 %v274, %v272
    %v313 = vpack.c.b16 %v275, %v273
    %v314 = vpack.c.b16 %v278, %v276
    %v315 = vpack.c.b16 %v279, %v277
    %v316 = vpack.c.b16 %v282, %v280
    %v317 = vpack.c.b16 %v283, %v281
    %v318 = vpack.c.b16 %v286, %v284
    %v319 = vpack.c.b16 %v287, %v285
    %352 = vmatprep.subr.bf16.mxu0 %v289
    %353 = vmatpush1.bf16.msra.mxu0 %v288
    %354 = vmatprep.subr.bf16.mxu0 %v291
    %355 = vmatpush1.bf16.msra.mxu0 %v290
    %356 = vmatprep.subr.bf16.mxu0 %v293
    %357 = vmatpush1.bf16.msra.mxu0 %v292
    %358 = vmatprep.subr.bf16.mxu0 %v295
    %359 = vmatpush1.bf16.msra.mxu0 %v294
    %360 = vmatprep.subr.bf16.mxu0 %v297
    %361 = vmatpush1.bf16.msra.mxu0 %v296
    %362 = vmatprep.subr.bf16.mxu0 %v299
    %363 = vmatpush1.bf16.msra.mxu0 %v298
    %364 = vmatprep.subr.bf16.mxu0 %v301
    %365 = vmatpush1.bf16.msra.mxu0 %v300
    %366 = vmatprep.subr.bf16.mxu0 %v303
    %367 = vmatpush1.bf16.msra.mxu0 %v302
    %368 = vmatprep.subr.bf16.mxu0 %v305
    %369 = vmatpush1.bf16.msra.mxu0 %v304
    %370 = vmatprep.subr.bf16.mxu0 %v307
    %371 = vmatpush1.bf16.msra.mxu0 %v306
    %372 = vmatprep.subr.bf16.mxu0 %v309
    %373 = vmatpush1.bf16.msra.mxu0 %v308
    %374 = vmatprep.subr.bf16.mxu0 %v311
    %375 = vmatpush1.bf16.msra.mxu0 %v310
    %376 = vmatprep.subr.bf16.mxu0 %v313
    %377 = vmatpush1.bf16.msra.mxu0 %v312
    %378 = vmatprep.subr.bf16.mxu0 %v315
    %379 = vmatpush1.bf16.msra.mxu0 %v314
    %380 = vmatprep.subr.bf16.mxu0 %v317
    %381 = vmatpush1.bf16.msra.mxu0 %v316
    %382 = vmatprep.subr.bf16.mxu0 %v319
    %383 = vmatpush1.bf16.msra.mxu0 %v318
    %384 = vmatprep.mubr.bf16.mxu0 %v148
    %385 = vmatmul.mubr.bf16.gmra.mrb[0].mxu0 %v147
    %v386 = vpop.f32.mrb[0].mxu0
    %v387 = vadd.f32 %v185, %v386
    %v388 = vpop.f32.mrb[0].mxu0
    %v389 = vadd.f32 %v189, %v388
    %v390 = vpop.f32.mrb[0].mxu0
    %v391 = vpop.f32.mrb[0].mxu0
    %392 = vdwg.mxu0
    %v393 = vmax.f32 %v387, 0.0
    %v394 = vmax.f32 %v389, 0.0
    %v395 = vpack.c.bf16 %v393, %v393
    %v396 = vpack.c.bf16 %v394, %v394
    %v397 = vld [vmem:[#allocation7 + $0x8] sm:$0xf]
    %v398 = vld [vmem:[#allocation7 + $0x14] sm:$0xf]
    %v399 = vld [vmem:[#allocation7 + $0x20] sm:$0xf]
    %v400 = vld [vmem:[#allocation7 + $0x2c] sm:$0xf]
    %v401 = vld [vmem:[#allocation7 + $0x38] sm:$0xf]
    %v402 = vld [vmem:[#allocation7 + $0x44] sm:$0xf]
    %v403 = vld [vmem:[#allocation7 + $0x50] sm:$0xf]
    %v404 = vld [vmem:[#allocation7 + $0x5c] sm:$0xf]
    %v405 = vld [vmem:[#allocation7 + $0x68] sm:$0xf]
    %v406 = vld [vmem:[#allocation7 + $0x74] sm:$0xf]
    %v407 = vld [vmem:[#allocation7 + $0x80] sm:$0xf]
    %v408 = vld [vmem:[#allocation7 + $0x8c] sm:$0xf]
    %v409 = vld [vmem:[#allocation7 + $0x98] sm:$0xf]
    %v410 = vld [vmem:[#allocation7 + $0xa4] sm:$0xf]
    %v411 = vld [vmem:[#allocation7 + $0xb0] sm:$0xf]
    %v412 = vld [vmem:[#allocation7 + $0xbc] sm:$0xf]
    %v413 = vld [vmem:[#allocation7 + $0xc8] sm:$0xf]
    %v414 = vld [vmem:[#allocation7 + $0xd4] sm:$0xf]
    %v415 = vld [vmem:[#allocation7 + $0xe0] sm:$0xf]
    %v416 = vld [vmem:[#allocation7 + $0xec] sm:$0xf]
    %v417 = vld [vmem:[#allocation7 + $0xf8] sm:$0xf]
    %v418 = vld [vmem:[#allocation7 + $0x104] sm:$0xf]
    %v419 = vld [vmem:[#allocation7 + $0x110] sm:$0xf]
    %v420 = vld [vmem:[#allocation7 + $0x11c] sm:$0xf]
    %v421 = vld [vmem:[#allocation7 + $0x128] sm:$0xf]
    %v422 = vld [vmem:[#allocation7 + $0x134] sm:$0xf]
    %v423 = vld [vmem:[#allocation7 + $0x140] sm:$0xf]
    %v424 = vld [vmem:[#allocation7 + $0x14c] sm:$0xf]
    %v425 = vld [vmem:[#allocation7 + $0x158] sm:$0xf]
    %v426 = vld [vmem:[#allocation7 + $0x164] sm:$0xf]
    %v427 = vld [vmem:[#allocation7 + $0x170] sm:$0xf]
    %v428 = vld [vmem:[#allocation7 + $0x17c] sm:$0xf]
    %v461 = vunpack.c.l.b16 %v397
    %v462 = vunpack.c.l.b16 %v398
    %v463 = vunpack.c.l.b16 %v399
    %v464 = vunpack.c.l.b16 %v400
    %v465 = vunpack.c.l.b16 %v401
    %v466 = vunpack.c.l.b16 %v402
    %v467 = vunpack.c.l.b16 %v403
    %v468 = vunpack.c.l.b16 %v404
    %v469 = vunpack.c.l.b16 %v405
    %v470 = vunpack.c.l.b16 %v406
    %v471 = vunpack.c.l.b16 %v407
    %v472 = vunpack.c.l.b16 %v408
    %v473 = vunpack.c.l.b16 %v409
    %v474 = vunpack.c.l.b16 %v410
    %v475 = vunpack.c.l.b16 %v411
    %v476 = vunpack.c.l.b16 %v412
    %v477 = vunpack.c.l.b16 %v413
    %v478 = vunpack.c.l.b16 %v414
    %v479 = vunpack.c.l.b16 %v415
    %v480 = vunpack.c.l.b16 %v416
    %v481 = vunpack.c.l.b16 %v417
    %v482 = vunpack.c.l.b16 %v418
    %v483 = vunpack.c.l.b16 %v419
    %v484 = vunpack.c.l.b16 %v420
    %v485 = vunpack.c.l.b16 %v421
    %v486 = vunpack.c.l.b16 %v422
    %v487 = vunpack.c.l.b16 %v423
    %v488 = vunpack.c.l.b16 %v424
    %v489 = vunpack.c.l.b16 %v425
    %v490 = vunpack.c.l.b16 %v426
    %v491 = vunpack.c.l.b16 %v427
    %v492 = vunpack.c.l.b16 %v428
    %v493 = vpack.c.b16 %v462, %v461
    %v494 = vpack.c.b16 %v464, %v463
    %v495 = vpack.c.b16 %v466, %v465
    %v496 = vpack.c.b16 %v468, %v467
    %v497 = vpack.c.b16 %v470, %v469
    %v498 = vpack.c.b16 %v472, %v471
    %v499 = vpack.c.b16 %v474, %v473
    %v500 = vpack.c.b16 %v476, %v475
    %v501 = vpack.c.b16 %v478, %v477
    %v502 = vpack.c.b16 %v480, %v479
    %v503 = vpack.c.b16 %v482, %v481
    %v504 = vpack.c.b16 %v484, %v483
    %v505 = vpack.c.b16 %v486, %v485
    %v506 = vpack.c.b16 %v488, %v487
    %v507 = vpack.c.b16 %v490, %v489
    %v508 = vpack.c.b16 %v492, %v491
    %525 = vmatprep.subr.bf16.mxu0 0
    %526 = vmatpush1.bf16.msra.mxu0 %v493
    %527 = vmatprep.subr.bf16.mxu0 0
    %528 = vmatpush1.bf16.msra.mxu0 %v494
    %529 = vmatprep.subr.bf16.mxu0 0
    %530 = vmatpush1.bf16.msra.mxu0 %v495
    %531 = vmatprep.subr.bf16.mxu0 0
    %532 = vmatpush1.bf16.msra.mxu0 %v496
    %533 = vmatprep.subr.bf16.mxu0 0
    %534 = vmatpush1.bf16.msra.mxu0 %v497
    %535 = vmatprep.subr.bf16.mxu0 0
    %536 = vmatpush1.bf16.msra.mxu0 %v498
    %537 = vmatprep.subr.bf16.mxu0 0
    %538 = vmatpush1.bf16.msra.mxu0 %v499
    %539 = vmatprep.subr.bf16.mxu0 0
    %540 = vmatpush1.bf16.msra.mxu0 %v500
    %541 = vmatprep.subr.bf16.mxu0 0
    %542 = vmatpush1.bf16.msra.mxu0 %v501
    %543 = vmatprep.subr.bf16.mxu0 0
    %544 = vmatpush1.bf16.msra.mxu0 %v502
    %545 = vmatprep.subr.bf16.mxu0 0
    %546 = vmatpush1.bf16.msra.mxu0 %v503
    %547 = vmatprep.subr.bf16.mxu0 0
    %548 = vmatpush1.bf16.msra.mxu0 %v504
    %549 = vmatprep.subr.bf16.mxu0 0
    %550 = vmatpush1.bf16.msra.mxu0 %v505
    %551 = vmatprep.subr.bf16.mxu0 0
    %552 = vmatpush1.bf16.msra.mxu0 %v506
    %553 = vmatprep.subr.bf16.mxu0 0
    %554 = vmatpush1.bf16.msra.mxu0 %v507
    %555 = vmatprep.subr.bf16.mxu0 0
    %556 = vmatpush1.bf16.msra.mxu0 %v508
    %557 = vmatprep.mubr.bf16.mxu0 %v396
    %558 = vmatmul.mubr.bf16.gmra.mrb[0].mxu0 %v395
    %v559 = vpop.f32.mrb[0].mxu0
    %v560 = vadd.f32 %v71, %v559
    %v561 = vpop.f32.mrb[0].mxu0
    %v562 = vpop.f32.mrb[0].mxu0
    %v563 = vpop.f32.mrb[0].mxu0
    %564 = vdwg.mxu0
    %v565 = vtanh.pop %v560
    %v566 = vmul.f32 %v565, %v72
    %v567 = vadd.f32 %v566, %v73
    %568 = vst [vmem:[#allocation10] sm:$0xff] %v567
    // Predicated region
    $region34: #{tpu_custom_call.1} parent=1 // pred_check
      _
    $region35: #{tpu_custom_call.1} parent=1 // pred_check_branch
      %570 = sbr.rel (0) target = $region37
    $region36: #{tpu_custom_call.1} parent=1 // pred_region
      %s572 = ssub.s32 128, 128
      %573 = vsyncadd [#allocation4], %s572
      %s575 = sshll.u32 [#allocation10], 4
      %s576 = int_to_ptr.vmem [resolvable:$true] %s575
      %578 = dma.vmem_to_hbm [thread:$0]  %s576, 128, %s4, [#allocation4]
    $region37: #{tpu_custom_call.1} parent=1 // pred_fallthru
      _
    // Predicated region
    $region38: #{tpu_custom_call.1} parent=1 // pred_check
      _
    $region39: #{tpu_custom_call.1} parent=1 // pred_check_branch
      %580 = sbr.rel (0) target = $region41
    $region40: #{tpu_custom_call.1} parent=1 // pred_region
      %581 = dma.done [#allocation4], 128
    $region41: #{tpu_custom_call.1} parent=1 // pred_fallthru
      _
    %582 = vsyncpa [#allocation3], 1
    %583 = vsyncpa [#allocation6], 1
    %584 = vsyncpa [#allocation9], 1
    %585 = vsyncpa [#allocation4], 1

</llo_original>
